<compile_context>
chip_gen: v7x
topology: tpu7x:2x2x1
jax: 0.10.0
libtpu: 0.0.40
codegen_flags: <defaults>
</compile_context>

<pallas_src>
import functools

import jax
import jax.numpy as jnp
from jax import lax
from jax.experimental import pallas as pl
from jax.experimental.pallas import tpu as pltpu


# ---------------------------------------------------------------------------
# Pass 1: F.normalize(p=2, dim=-1, eps=1e-12), bf16 output for the MXU.
# ---------------------------------------------------------------------------
def _normalize_kernel(x_ref, xn_ref, *, eps):
    x = x_ref[...].astype(jnp.float32)                       # (TILE, D)
    ssq = jnp.sum(x * x, axis=-1, keepdims=True)             # (TILE, 1)
    # x / max(||x||, eps)  ==  x * rsqrt(max(ssq, eps^2))    (rsqrt -> EUP slot)
    inv = lax.rsqrt(jnp.maximum(ssq, eps * eps))
    xn_ref[...] = (x * inv).astype(xn_ref.dtype)


# ---------------------------------------------------------------------------
# Pass 2: tiled contrast loss over the upper-triangular blocks.
# ---------------------------------------------------------------------------
def _contrast_tile_kernel(ib_ref, jb_ref,            # scalar-prefetch (SMEM)
                          xi_ref, xj_ref,            # (TILE, D) bf16 row blocks
                          li_ref, lj_ref,            # (TILE, 1) / (1, TILE) int32
                          out_ref,                   # (1, 1) f32 output
                          acc_ref,                   # (1, 1) f32 VMEM scratch
                          *, alpha, n_actual, tile):
    t = pl.program_id(0)

    @pl.when(t == 0)
    def _():
        acc_ref[...] = jnp.zeros_like(acc_ref)

    ib = ib_ref[t]
    jb = jb_ref[t]

    # (TILE, TILE) cosine-similarity tile: bf16 operands, f32 accumulate (MXU).
    sim = lax.dot_general(
        xi_ref[...], xj_ref[...], (((1,), (1,)), ((), ())),
        preferred_element_type=jnp.float32,
    )

    # label_matrix != 0  <=>  labels_i != labels_j (int32 broadcast compare, VPU).
    diff = li_ref[...] != lj_ref[...]                         # (TILE, TILE)

    loss = jnp.where(diff, 1.0 - sim, jnp.maximum(sim - alpha, 0.0))

    # Mask out padded rows / columns (N padded up to a tile multiple).
    row = ib * tile + lax.broadcasted_iota(jnp.int32, sim.shape, 0)
    col = jb * tile + lax.broadcasted_iota(jnp.int32, sim.shape, 1)
    loss = jnp.where((row < n_actual) & (col < n_actual), loss, 0.0)

    # Partial sum of this tile; off-diagonal tiles count twice (symmetry).
    partial = jnp.sum(jnp.sum(loss, axis=1, keepdims=True), axis=0, keepdims=True)
    weight = 2.0 - (ib == jb).astype(jnp.float32)             # 1 on diag, 2 off-diag
    acc_ref[...] += weight * partial

    @pl.when(t == pl.num_programs(0) - 1)
    def _():
        out_ref[...] = acc_ref[...] / float(n_actual * n_actual)


def _choose_tile(n):
    # 256 matches the 2x256^2 MXU on v6e/v7x (drop to 128 if tuning for v5e).
    if n >= 256:
        return 256
    return max(8, -(-n // 8) * 8)     # round up to a sublane multiple, single block


def multiclass_contrast_loss(tokens, labels, alpha=0.3):
    """tokens: (N, D) float, labels: (N,) int. Returns scalar f32 loss."""
    assert tokens.ndim == 2 and labels.shape[0] == tokens.shape[0]
    n, d = tokens.shape

    tile = _choose_tile(n)
    padded_n = -(-n // tile) * tile
    nb = padded_n // tile

    tokens_f32 = tokens.astype(jnp.float32)
    labels_i32 = labels.astype(jnp.int32)
    if padded_n != n:
        tokens_f32 = jnp.pad(tokens_f32, ((0, padded_n - n), (0, 0)))
        labels_i32 = jnp.pad(labels_i32, ((0, padded_n - n),))

    # ---- Pass 1: normalize each row exactly once ----------------------------
    xn = pl.pallas_call(
        functools.partial(_normalize_kernel, eps=1e-12),
        out_shape=jax.ShapeDtypeStruct((padded_n, d), jnp.bfloat16),
        grid=(nb,),
        in_specs=[pl.BlockSpec((tile, d), lambda i: (i, 0))],
        out_specs=pl.BlockSpec((tile, d), lambda i: (i, 0)),
        compiler_params=pltpu.CompilerParams(dimension_semantics=("parallel",)),
    )(tokens_f32)

    lab_col = labels_i32.reshape(padded_n, 1)
    lab_row = labels_i32.reshape(1, padded_n)

    # Upper-triangular block schedule (ib <= jb), fed via scalar prefetch.
    ib_list, jb_list = [], []
    for i in range(nb):
        for j in range(i, nb):
            ib_list.append(i)
            jb_list.append(j)
    ib_arr = jnp.asarray(ib_list, dtype=jnp.int32)
    jb_arr = jnp.asarray(jb_list, dtype=jnp.int32)
    num_tiles = len(ib_list)

    kernel = functools.partial(
        _contrast_tile_kernel, alpha=float(alpha), n_actual=n, tile=tile)

    grid_spec = pltpu.PrefetchScalarGridSpec(
        num_scalar_prefetch=2,
        grid=(num_tiles,),
        in_specs=[
            pl.BlockSpec((tile, d), lambda t, ib, jb: (ib[t], 0)),   # i row-block
            pl.BlockSpec((tile, d), lambda t, ib, jb: (jb[t], 0)),   # j row-block
            pl.BlockSpec((tile, 1), lambda t, ib, jb: (ib[t], 0)),   # labels (column)
            pl.BlockSpec((1, tile), lambda t, ib, jb: (0, jb[t])),   # labels (row)
        ],
        out_specs=pl.BlockSpec((1, 1), lambda t, ib, jb: (0, 0)),
        scratch_shapes=[pltpu.VMEM((1, 1), jnp.float32)],
    )

    out = pl.pallas_call(
        kernel,
        out_shape=jax.ShapeDtypeStruct((1, 1), jnp.float32),
        grid_spec=grid_spec,
        compiler_params=pltpu.CompilerParams(
            dimension_semantics=("arbitrary",),      # single accumulator carried across steps
            vmem_limit_bytes=64 * 1024 * 1024,       # headroom above the 16/32 MiB default
        ),
    )(ib_arr, jb_arr, xn, xn, lab_col, lab_row)
    return out[0, 0]


def _reference(tokens, labels, alpha=0.3):
    x = tokens.astype(jnp.float32)
    xn = x / jnp.maximum(jnp.linalg.norm(x, axis=-1, keepdims=True), 1e-12)
    sim = xn @ xn.T
    lm = labels[:, None] - labels[None, :]
    loss = jnp.where(lm != 0, 1.0 - sim, jnp.maximum(sim - alpha, 0.0))
    return jnp.mean(loss)


if __name__ == "__main__":
    key = jax.random.PRNGKey(0)
    k_tok, k_lab, k_tok2, k_lab2 = jax.random.split(key, 4)

    # Small case consistent with the module: seq=8 tokens, hidden=32 (single tile).
    N, D = 8, 32
    tokens = jax.random.normal(k_tok, (N, D), dtype=jnp.float32)
    labels = jax.random.randint(k_lab, (N,), 0, 3, dtype=jnp.int32)
    loss = jax.block_until_ready(multiclass_contrast_loss(tokens, labels, alpha=0.3))
    ref = _reference(tokens, labels, alpha=0.3)
    # bf16 MXU inputs (f32 accumulate) -> loosened tolerance vs the all-f32 reference.
    assert jnp.allclose(loss, ref, atol=5e-3, rtol=5e-3), (loss, ref)

    # Multi-tile case exercising padding + the symmetric upper-triangular schedule.
    N2, D2 = 272, 64
    tokens2 = jax.random.normal(k_tok2, (N2, D2), dtype=jnp.float32)
    labels2 = jax.random.randint(k_lab2, (N2,), 0, 5, dtype=jnp.int32)
    loss2 = jax.block_until_ready(multiclass_contrast_loss(tokens2, labels2, alpha=0.3))
    ref2 = _reference(tokens2, labels2, alpha=0.3)
    assert jnp.allclose(loss2, ref2, atol=5e-3, rtol=5e-3), (loss2, ref2)

    print("KERNEL_OK")
</pallas_src>

<mosaic_0001>
module attributes {stable_mosaic.version = 11 : i64} {
  func.func @_normalize_kernel(%arg0: i32, %arg1: memref<8x32xf32, #tpu.memory_space<vmem>>, %arg2: memref<8x32xbf16, #tpu.memory_space<vmem>>) attributes {dimension_semantics = [#tpu.dimension_semantics<parallel>], iteration_bounds = array<i64: 1>, scalar_prefetch = 0 : i64, scratch_operands = 0 : i64, tpu.core_type = #tpu.core_type<tc>, window_params = [{transform_indices = @transform_0, window_bounds = array<i64: 8, 32>}, {transform_indices = @transform_1, window_bounds = array<i64: 8, 32>}]} {
    %c0 = arith.constant 0 : index
    %c0_0 = arith.constant 0 : index
    %0 = vector.load %arg1[%c0, %c0_0] : memref<8x32xf32, #tpu.memory_space<vmem>>, vector<8x32xf32>
    %1 = arith.mulf %0, %0 : vector<8x32xf32>
    %cst = arith.constant dense<0.000000e+00> : vector<8xf32>
    %2 = vector.multi_reduction <add>, %1, %cst [1] : vector<8x32xf32> to vector<8xf32>
    %3 = vector.shape_cast %2 : vector<8xf32> to vector<8x1xf32>
    %cst_1 = arith.constant 1.000000e-24 : f32
    %4 = vector.broadcast %cst_1 : f32 to vector<8x1xf32>
    %5 = arith.maximumf %3, %4 : vector<8x1xf32>
    %6 = math.rsqrt %5 : vector<8x1xf32>
    %7 = vector.broadcast %6 : vector<8x1xf32> to vector<8x32xf32>
    %8 = arith.mulf %0, %7 : vector<8x32xf32>
    %9 = arith.truncf %8 : vector<8x32xf32> to vector<8x32xbf16>
    %c0_2 = arith.constant 0 : index
    %c0_3 = arith.constant 0 : index
    %10 = vector.load %arg2[%c0_2, %c0_3] : memref<8x32xbf16, #tpu.memory_space<vmem>>, vector<8x32xbf16>
    tpu.vector_store %arg2[%c0_2, %c0_3], %9 {strides = array<i32>} : memref<8x32xbf16, #tpu.memory_space<vmem>>, vector<8x32xbf16>,
    return
  }
  func.func @transform_0(%arg0: i32) -> (i32, i32) {
    %c0_i32 = arith.constant 0 : i32
    %c0_i32_0 = arith.constant 0 : i32
    return %arg0, %c0_i32 : i32, i32
  }
  func.func @transform_1(%arg0: i32) -> (i32, i32) {
    %c0_i32 = arith.constant 0 : i32
    %c0_i32_0 = arith.constant 0 : i32
    return %arg0, %c0_i32 : i32, i32
  }
}

</mosaic_0001>

<llo_original>
// kernel: tpu_custom_call.1
$region0: #{tpu_custom_call.1}
  #allocation0 [shape = 'u32[]', space=smem, size = 0x4, offset = 0x4, fixed_abs, tag = 'smem constant byte address 0x4 - core index']
  #allocation1 [shape = 'u32[144,128]{1,0:T(1,128)}', space=vmem, size = 0x12000, scoped, tag = 'internal scratch']
  %s0 = inlined_call_operand.hbm [shape: f32[8,32], index: 0, kind: input, shape index: {}]
  %s1 = inlined_call_operand.hbm [shape: bf16[8,32], index: 1, kind: output, shape index: {}]
  %s2 = sld [smem:[#allocation0]]
  $region18: #{tpu_custom_call.1} parent=0
    _
  %s4 = ssub.s32 1, %s2
  %s5 = scalar_select 0, %s4, %s2
  $region1: #{tpu_custom_call.1} parent=0
    #allocation2 [shape = 'u8[4096]{0}', space=vmem, size = 0x1000, scoped, tag = 'input window, operand 0, single buffered']
    #allocation3 [shape = 's32[1]{0}', space=sflag, size = 0x4, scoped, tag = 'scoped memory for tpu_custom_call.1']
    #allocation4 [shape = 's32[1]{0}', space=sflag, size = 0x4, scoped, tag = 'scoped memory for tpu_custom_call.1']
    #allocation5 [shape = 'u8[2048]{0}', space=vmem, size = 0x800, scoped, tag = 'output window, operand 0, single buffered']
    %6 = vsyncpa [#allocation3], 0
    %7 = vsyncpa [#allocation4], 0
    // Predicated region
    $region2: #{tpu_custom_call.1} parent=1 // pred_check
      _
    $region3: #{tpu_custom_call.1} parent=1 // pred_check_branch
      %9 = sbr.rel (0) target = $region5
    $region4: #{tpu_custom_call.1} parent=1 // pred_region
      %s11 = ssub.s32 128, 128
      %12 = vsyncadd [#allocation3], %s11
      %s14 = sshll.u32 [#allocation2], 4
      %s15 = int_to_ptr.vmem [resolvable:$true] %s14
      %17 = dma.hbm_to_vmem [thread:$0]  %s0, 128, %s15, [#allocation3]
    $region5: #{tpu_custom_call.1} parent=1 // pred_fallthru
      _
    // Predicated region
    $region6: #{tpu_custom_call.1} parent=1 // pred_check
      _
    $region7: #{tpu_custom_call.1} parent=1 // pred_check_branch
      %19 = sbr.rel (0) target = $region9
    $region8: #{tpu_custom_call.1} parent=1 // pred_region
      %20 = dma.done [#allocation3], 128
    $region9: #{tpu_custom_call.1} parent=1 // pred_fallthru
      _
    %v21 = vld [vmem:[#allocation2] sm:$0xff]
    %v22 = vmul.f32 %v21, %v21
    %vm23 = vcmask 261120
    %v24 = vsel %vm23, %v22, 0.0
    %25 = vadd.xlane.f32.xlu0 %v24
    %v26 = vpop.xlane.xlu0 %25
    %v27 = vmax.f32 %v26, 1e-24
    %v28 = vrsqrt.pop %v27
    %v29 = vmul.f32 %v21, %v28
    %v30 = vpack.c.bf16 %v29, %v29
    %vm31 = vcmask 257024
    %32 = vst.msk [vmem:[#allocation5] sm:$0xf] %vm31, %v30
    // Predicated region
    $region10: #{tpu_custom_call.1} parent=1 // pred_check
      _
    $region11: #{tpu_custom_call.1} parent=1 // pred_check_branch
      %34 = sbr.rel (0) target = $region13
    $region12: #{tpu_custom_call.1} parent=1 // pred_region
      %s36 = ssub.s32 64, 64
      %37 = vsyncadd [#allocation4], %s36
      %s39 = sshll.u32 [#allocation5], 4
      %s40 = int_to_ptr.vmem [resolvable:$true] %s39
      %42 = dma.vmem_to_hbm [thread:$0]  %s40, 64, %s1, [#allocation4]
    $region13: #{tpu_custom_call.1} parent=1 // pred_fallthru
      _
    // Predicated region
    $region14: #{tpu_custom_call.1} parent=1 // pred_check
      _
    $region15: #{tpu_custom_call.1} parent=1 // pred_check_branch
      %44 = sbr.rel (0) target = $region17
    $region16: #{tpu_custom_call.1} parent=1 // pred_region
      %45 = dma.done [#allocation4], 64
    $region17: #{tpu_custom_call.1} parent=1 // pred_fallthru
      _
    %46 = vsyncpa [#allocation3], 1
    %47 = vsyncpa [#allocation4], 1

</llo_original>
